<compile_context>
chip_gen: v7x
topology: tpu7x:2x2x1
jax: 0.10.0
libtpu: 0.0.40
codegen_flags: <defaults>
</compile_context>

<pallas_src>
import jax
import jax.numpy as jnp
from jax.experimental import pallas as pl
from jax.experimental.pallas import tpu as pltpu


# ----------------------------------------------------------------------------
# Synthetic data tree + dendro model tree (mirrors the PyTorch module __init__)
# ----------------------------------------------------------------------------
class DataNode:
    def __init__(self, is_leaf=False):
        self.is_leaf = is_leaf
        self.descendants = []


class DendroLinNode:
    def __init__(self, weight, parent=None, is_leaf=False):
        self.weight = weight          # jnp array (1, input_dim) or None for leaves
        self.children = []
        self.is_leaf = is_leaf
        self.parent = parent
        self.weight_list = []


class DendroLinRegJax:
    """JAX/Pallas port of DendroLinReg (forward pass only)."""

    def __init__(self, input_dim, data_root, key):
        self.input_dim = input_dim
        self.leaf_list = []
        self._key = key
        # root weights ~ Normal(0, 0.5)
        self._key, sub = jax.random.split(self._key)
        initial_weights = 0.5 * jax.random.normal(sub, (1, input_dim), dtype=jnp.float32)
        self.model_root = DendroLinNode(initial_weights)
        self._construct_model_tree(self.model_root, data_root)

    def _construct_model_tree(self, model_node, data_node):
        for data_child in data_node.descendants:
            if data_child.is_leaf:
                child_weight = None
            else:
                # internal-node weights ~ Normal(0, 1e-4)
                self._key, sub = jax.random.split(self._key)
                child_weight = 1e-4 * jax.random.normal(
                    sub, (1, self.input_dim), dtype=jnp.float32)
            child_node = DendroLinNode(weight=child_weight,
                                       is_leaf=data_child.is_leaf,
                                       parent=model_node)
            model_node.children.append(child_node)
            self._construct_model_tree(child_node, data_child)

        if not model_node.is_leaf:
            model_node.weight_list.append(model_node.weight)
        curr_parent = model_node.parent
        while curr_parent is not None:
            model_node.weight_list.append(curr_parent.weight)
            curr_parent = curr_parent.parent
        if model_node.is_leaf:
            self.leaf_list.append(model_node)

    def forward(self, leaf_node, x):
        # torch.cat(weight_list) -> stack ancestor weights along dim 0
        w_stack = jnp.concatenate(leaf_node.weight_list, axis=0)  # (L, input_dim)
        return dendro_linreg_forward(w_stack, x)                  # (batch,)

    # TODO(synk): calc_delta_loss / recursively_add_deltas (L1 regularizer over
    # internal-node weights) is training-side bookkeeping, not part of forward.


# ----------------------------------------------------------------------------
# Pallas kernel: batch-tiled matvec against the (pre-summed) ancestor weights
# ----------------------------------------------------------------------------
def _dendro_linreg_kernel(w_ref, x_ref, o_ref):
    # w_ref: (1, D) summed ancestor weight -- same block index every grid step,
    #        so it stays VMEM-resident across the whole grid.
    # x_ref: (TM, D) batch tile.   o_ref: (TM, 1).
    #
    # VPU multiply + lane reduction instead of a (TM,D)x(D,1) MXU matmul: the
    # matmul would light up <1% of the MXU, while this uses otherwise-idle
    # VALU/XLU slots and keeps the critical path purely HBM-DMA-bound.
    prod = x_ref[...] * w_ref[...]                                # (TM, D), f32
    o_ref[...] = jnp.sum(prod, axis=-1, keepdims=True).astype(o_ref.dtype)


def _round_up(n, m):
    return ((n + m - 1) // m) * m


def dendro_linreg_forward(w_stack, x, *, block_m=512):
    """w_stack: (L, D) float32, x: (B, D) float32 -> (B,) float32."""
    x = x.astype(jnp.float32)
    B, D = x.shape

    # Hoist the x-independent ancestor-weight sum out of the kernel (tiny
    # (L, D) reduction in plain XLA); the kernel only ever sees (1, D).
    w_sum = jnp.sum(w_stack.astype(jnp.float32), axis=0, keepdims=True)  # (1, D)

    # Batch tile size: biggest multiple of 8 such that the two double-buffered
    # x tiles fit a conservative VMEM budget (safe on v5e / v6e / v7x).
    x_bytes_budget = 16 * 1024 * 1024                 # 2 * TM * D * 4 <= this
    tm_cap = max(8, (x_bytes_budget // (2 * D * 4)) // 8 * 8)
    tm = min(block_m, tm_cap, _round_up(B, 8))
    tm = max(8, (tm // 8) * 8)

    # Pad batch to a multiple of the tile (padded rows are discarded below).
    B_pad = _round_up(B, tm)
    x_pad = x if B_pad == B else jnp.pad(x, ((0, B_pad - B), (0, 0)))

    grid = (pl.cdiv(B_pad, tm),)
    # TODO(synk): for very large D (>~32K f32) also tile D with a trailing
    # "arbitrary" reduction axis + f32 accumulator scratch.

    out = pl.pallas_call(
        _dendro_linreg_kernel,
        out_shape=jax.ShapeDtypeStruct((B_pad, 1), jnp.float32),
        grid_spec=pl.GridSpec(
            grid=grid,
            in_specs=[
                # summed weight: same block every step -> VMEM-resident
                pl.BlockSpec((1, D), lambda i: (0, 0)),
                # batch-tiled x: double-buffered HBM->VMEM pipeline
                pl.BlockSpec((tm, D), lambda i: (i, 0)),
            ],
            out_specs=pl.BlockSpec((tm, 1), lambda i: (i, 0)),
        ),
        compiler_params=pltpu.CompilerParams(
            # batch axis is embarrassingly parallel -> v7x dual-TC sharding;
            # harmless no-op on single-TC v5e/v6e.
            dimension_semantics=("parallel",),
            # raise v5e's 16 MiB scoped default; still safe on v7x (64 MiB).
            vmem_limit_bytes=32 * 1024 * 1024,
        ),
    )(w_sum, x_pad)

    return out[:B, 0]  # match F.linear(x, 1-D weight) -> shape (batch,)


# ----------------------------------------------------------------------------
# Demo
# ----------------------------------------------------------------------------
def build_small_data_tree():
    # root -> 2 internal children -> 2 leaves each
    root = DataNode()
    for _ in range(2):
        internal = DataNode()
        internal.descendants = [DataNode(is_leaf=True), DataNode(is_leaf=True)]
        root.descendants.append(internal)
    return root


if __name__ == "__main__":
    key = jax.random.PRNGKey(0)
    key, k_model, k_x = jax.random.split(key, 3)

    input_dim = 32
    batch = 8

    data_root = build_small_data_tree()
    model = DendroLinRegJax(input_dim, data_root, k_model)

    x = jax.random.normal(k_x, (batch, input_dim), dtype=jnp.float32)

    leaf = model.leaf_list[0]
    y = model.forward(leaf, x)
    jax.block_until_ready(y)

    # reference check in plain JAX
    w_ref = jnp.sum(jnp.concatenate(leaf.weight_list, axis=0), axis=0)  # (D,)
    y_ref = x @ w_ref
    assert y.shape == (batch,)
    assert jnp.allclose(y, y_ref, atol=1e-5, rtol=1e-5)

    # second check: batch not a multiple of the tile (exercises padding path)
    key, k_x2 = jax.random.split(key)
    x2 = jax.random.normal(k_x2, (batch + 3, input_dim), dtype=jnp.float32)
    y2 = model.forward(leaf, x2)
    jax.block_until_ready(y2)
    assert y2.shape == (batch + 3,)
    assert jnp.allclose(y2, x2 @ w_ref, atol=1e-5, rtol=1e-5)

    print("KERNEL_OK")
</pallas_src>

<mosaic_0001>
module attributes {stable_mosaic.version = 11 : i64} {
  func.func @_dendro_linreg_kernel(%arg0: i32, %arg1: memref<1x32xf32, #tpu.memory_space<vmem>>, %arg2: memref<8x32xf32, #tpu.memory_space<vmem>>, %arg3: memref<8x1xf32, #tpu.memory_space<vmem>>) attributes {dimension_semantics = [#tpu.dimension_semantics<parallel>], iteration_bounds = array<i64: 1>, scalar_prefetch = 0 : i64, scratch_operands = 0 : i64, tpu.core_type = #tpu.core_type<tc>, window_params = [{pipeline_mode = #tpu.pipeline_mode<synchronous>, transform_indices = @transform_0, window_bounds = array<i64: 1, 32>}, {transform_indices = @transform_1, window_bounds = array<i64: 8, 32>}, {transform_indices = @transform_2, window_bounds = array<i64: 8, 1>}]} {
    %c0 = arith.constant 0 : index
    %c0_0 = arith.constant 0 : index
    %0 = vector.load %arg2[%c0, %c0_0] : memref<8x32xf32, #tpu.memory_space<vmem>>, vector<8x32xf32>
    %c0_1 = arith.constant 0 : index
    %c0_2 = arith.constant 0 : index
    %1 = vector.load %arg1[%c0_1, %c0_2] : memref<1x32xf32, #tpu.memory_space<vmem>>, vector<1x32xf32>
    %2 = vector.broadcast %1 : vector<1x32xf32> to vector<8x32xf32>
    %3 = arith.mulf %0, %2 : vector<8x32xf32>
    %cst = arith.constant dense<0.000000e+00> : vector<8xf32>
    %4 = vector.multi_reduction <add>, %3, %cst [1] : vector<8x32xf32> to vector<8xf32>
    %5 = vector.shape_cast %4 : vector<8xf32> to vector<8x1xf32>
    %c0_3 = arith.constant 0 : index
    %c0_4 = arith.constant 0 : index
    %6 = vector.load %arg3[%c0_3, %c0_4] : memref<8x1xf32, #tpu.memory_space<vmem>>, vector<8x1xf32>
    tpu.vector_store %arg3[%c0_3, %c0_4], %5 {strides = array<i32>} : memref<8x1xf32, #tpu.memory_space<vmem>>, vector<8x1xf32>,
    return
  }
  func.func @transform_0(%arg0: i32) -> (i32, i32) {
    %c0_i32 = arith.constant 0 : i32
    %c0_i32_0 = arith.constant 0 : i32
    %c0_i32_1 = arith.constant 0 : i32
    return %c0_i32, %c0_i32_0 : i32, i32
  }
  func.func @transform_1(%arg0: i32) -> (i32, i32) {
    %c0_i32 = arith.constant 0 : i32
    %c0_i32_0 = arith.constant 0 : i32
    return %arg0, %c0_i32 : i32, i32
  }
  func.func @transform_2(%arg0: i32) -> (i32, i32) {
    %c0_i32 = arith.constant 0 : i32
    %c0_i32_0 = arith.constant 0 : i32
    return %arg0, %c0_i32 : i32, i32
  }
}

</mosaic_0001>

<llo_original>
// kernel: tpu_custom_call.1
$region0: #{tpu_custom_call.1}
  #allocation0 [shape = 'u32[]', space=smem, size = 0x4, offset = 0x4, fixed_abs, tag = 'smem constant byte address 0x4 - core index']
  #allocation1 [shape = 'u32[144,128]{1,0:T(1,128)}', space=vmem, size = 0x12000, scoped, tag = 'internal scratch']
  %s0 = inlined_call_operand.hbm [shape: f32[1,32], index: 0, kind: input, shape index: {}]
  %s1 = inlined_call_operand.hbm [shape: f32[8,32], index: 1, kind: input, shape index: {}]
  %s2 = inlined_call_operand.vmem [shape: f32[8,1], index: 2, kind: output, shape index: {}]
  %s3 = sld [smem:[#allocation0]]
  $region26: #{tpu_custom_call.1} parent=0
    _
  %s5 = ssub.s32 1, %s3
  %s6 = scalar_select 0, %s5, %s3
  $region1: #{tpu_custom_call.1} parent=0
    #allocation2 [shape = 'u8[512]{0}', space=vmem, size = 0x400, scoped, tag = 'input window, operand 0, single buffered']
    #allocation3 [shape = 's32[1]{0}', space=sflag, size = 0x4, scoped, tag = 'scoped memory for tpu_custom_call.1']
    #allocation4 [shape = 'u8[4096]{0}', space=vmem, size = 0x1000, scoped, tag = 'input window, operand 1, single buffered']
    #allocation5 [shape = 's32[1]{0}', space=sflag, size = 0x4, scoped, tag = 'scoped memory for tpu_custom_call.1']
    %7 = vsyncpa [#allocation3], 0
    %8 = vsyncpa [#allocation5], 0
    // Predicated region
    $region2: #{tpu_custom_call.1} parent=1 // pred_check
      _
    $region3: #{tpu_custom_call.1} parent=1 // pred_check_branch
      %10 = sbr.rel (0) target = $region5
    $region4: #{tpu_custom_call.1} parent=1 // pred_region
      %s12 = ssub.s32 16, 16
      %13 = vsyncadd [#allocation3], %s12
      %s15 = sshll.u32 [#allocation2], 4
      %s16 = int_to_ptr.vmem [resolvable:$true] %s15
      %18 = dma.hbm_to_vmem [thread:$0]  %s0, 16, %s16, [#allocation3]
    $region5: #{tpu_custom_call.1} parent=1 // pred_fallthru
      _
    // Predicated region
    $region6: #{tpu_custom_call.1} parent=1 // pred_check
      _
    $region7: #{tpu_custom_call.1} parent=1 // pred_check_branch
      %20 = sbr.rel (0) target = $region9
    $region8: #{tpu_custom_call.1} parent=1 // pred_region
      %s22 = ssub.s32 128, 128
      %23 = vsyncadd [#allocation5], %s22
      %s25 = sshll.u32 [#allocation4], 4
      %s26 = int_to_ptr.vmem [resolvable:$true] %s25
      %28 = dma.hbm_to_vmem [thread:$0]  %s1, 128, %s26, [#allocation5]
    $region9: #{tpu_custom_call.1} parent=1 // pred_fallthru
      _
    // Predicated region
    $region10: #{tpu_custom_call.1} parent=1 // pred_check
      _
    $region11: #{tpu_custom_call.1} parent=1 // pred_check_branch
      %30 = sbr.rel (0) target = $region13
    $region12: #{tpu_custom_call.1} parent=1 // pred_region
      %31 = dma.done [#allocation3], 16
    $region13: #{tpu_custom_call.1} parent=1 // pred_fallthru
      _
    // Predicated region
    $region14: #{tpu_custom_call.1} parent=1 // pred_check
      _
    $region15: #{tpu_custom_call.1} parent=1 // pred_check_branch
      %33 = sbr.rel (0) target = $region17
    $region16: #{tpu_custom_call.1} parent=1 // pred_region
      %34 = dma.done [#allocation5], 128
    $region17: #{tpu_custom_call.1} parent=1 // pred_fallthru
      _
    %v35 = vld [vmem:[#allocation4] sm:$0xff]
    %v36 = vld [vmem:[#allocation2] sm:$0x1]
    %v38 = vlaneseq
    %v39 = vshrl.u32 %v38, 7
    %v40 = vsub.s32 0, %v39
    %v41 = vrot.slane %v36, %v40
    %v43 = vmul.f32 %v35, %v41
    %vm44 = vcmask 261120
    %v45 = vsel %vm44, %v43, 0.0
    %46 = vadd.xlane.f32.xlu0 %v45
    %v47 = vpop.xlane.xlu0 %46
    %vm48 = vcmask 7168
    %49 = vst.msk [vmem:[%s2] sm:$0xff] %vm48, %v47
    // Predicated region
    $region18: #{tpu_custom_call.1} parent=1 // pred_check
      _
    $region19: #{tpu_custom_call.1} parent=1 // pred_check_branch
      %51 = sbr.rel (0) target = $region21
    $region20: #{tpu_custom_call.1} parent=1 // pred_region
      _
    $region21: #{tpu_custom_call.1} parent=1 // pred_fallthru
      _
    // Predicated region
    $region22: #{tpu_custom_call.1} parent=1 // pred_check
      _
    $region23: #{tpu_custom_call.1} parent=1 // pred_check_branch
      %53 = sbr.rel (0) target = $region25
    $region24: #{tpu_custom_call.1} parent=1 // pred_region
      _
    $region25: #{tpu_custom_call.1} parent=1 // pred_fallthru
      _
    %54 = vsyncpa [#allocation3], 1
    %55 = vsyncpa [#allocation5], 1

</llo_original>
